<compile_context>
chip_gen: v7x
topology: tpu7x:2x2x1
jax: 0.10.0
libtpu: 0.0.40
codegen_flags: <defaults>
</compile_context>

<pallas_src>
import functools

import numpy as np
import jax
import jax.numpy as jnp
from jax import lax
from jax.experimental import pallas as pl
from jax.experimental.pallas import tpu as pltpu

DOWNSAMPLE_FACTOR = 8  # kernel_size == stride == 8, padding == 3

# Finite fill that is exactly representable in bf16.  Every pooling window holds
# at least one real element (P = 3 < K = 8), so this behaves like -inf for any
# real input, and it stays finite through the MXU's bf16 decomposition.
_FILL = float(jnp.finfo(jnp.bfloat16).min)

# C[i, j] = sum_k A[i, k] * B[j, k]  (contract the minor/lane dim of both)
_NT_DIMS = (((1,), (1,)), ((), ()))


def _maxpool_kernel(x_ref, sel_ref, o_ref, xp_ref, *, K, P, H_used, W_used):
    # x_ref:   (B, H, W)        unpadded input block (B channel slices)
    # sel_ref: (W_out, Wc)      0/1 lane-selection matrix (fetched once)
    # o_ref:   (1, W_out, B*H_out)  lane-dense (transposed) output block
    # xp_ref:  (B, Hc, Wc) f32  padded scratch
    B, Hc, Wc = xp_ref.shape
    H_out = Hc // K
    f32 = jnp.float32

    # ---- assemble the padded block in VMEM (single copy of the real data) ----
    # Thin, data-independent pad strips:
    if P > 0:                                                       # top rows
        xp_ref[:, 0:P, :] = jnp.full((B, P, Wc), _FILL, f32)
    bot = Hc - (P + H_used)
    if bot > 0:                                                     # bottom rows
        xp_ref[:, P + H_used:Hc, :] = jnp.full((B, bot, Wc), _FILL, f32)
    if W_used < Wc:                                                 # right cols
        xp_ref[:, P:P + H_used, W_used:Wc] = jnp.full(
            (B, H_used, Wc - W_used), _FILL, f32)
    # Interior: the only touch of the real input data (upcast once to f32).
    xp_ref[:, P:P + H_used, 0:W_used] = x_ref[:, 0:H_used, 0:W_used].astype(f32)

    # ---- row windows: per-vreg sublane max (K == 8 == f32 sublane tile) ----
    # Folding B into the row dim keeps vregs dense even when H_out < 8.
    r = jnp.max(xp_ref[...].reshape(B * H_out, K, Wc), axis=1)     # (B*H_out, Wc)

    # ---- column windows: lane roll-tree (XLU rolls overlap with VPU maxes) ----
    # After the tree: s[:, c] = max(r[:, c-K+1 .. c]) with lane wrap.  Column
    # window j ends at lane c0 + j*K; for j == 0 the wrapped lanes land on fill
    # because W_used <= Wc - P, so the wrap implements the left padding.
    s = r
    shift = 1
    while shift < K:
        s = jnp.maximum(s, pltpu.roll(s, shift=shift, axis=1))
        shift *= 2

    # ---- compact every K-th lane with a precomputed 0/1 selection matmul.
    # NT form => result is (W_out, B*H_out): the large dim lands on lanes, so
    # the store below is lane-dense.  HIGHEST keeps the pick-one-lane exact.
    out_t = lax.dot_general(sel_ref[...], s, _NT_DIMS,
                            precision=lax.Precision.HIGHEST,
                            preferred_element_type=jnp.float32)
    o_ref[0] = out_t.astype(o_ref.dtype)


def _vmem_limit_bytes():
    """Per-generation VMEM limit: ~3/4 of physical, capped at 96 MiB."""
    try:
        cap = int(pltpu.get_tpu_info().vmem_capacity_bytes)
    except Exception:
        cap = 64 * 1024 * 1024          # conservative: v7x per-TensorCore VMEM
    return min((cap * 3) // 4, 96 * 1024 * 1024)


def _pick_block(nc, h, w, hc, wc, in_itemsize, vmem_limit):
    """Channels per grid step, sized against the true per-step working set."""
    per_ch = (2 * h * w * in_itemsize                       # double-buffered input
              + hc * wc * 4                                 # padded f32 scratch
              + 4 * (hc // DOWNSAMPLE_FACTOR) * wc * 4      # roll-tree temporaries
              + 1024)                                       # slack
    budget = (vmem_limit * 7) // 10
    b = max(1, budget // per_ch)
    # Keep >= 4 grid steps when the channel count allows: on v7x each of the two
    # TensorCores then runs >= 2 steps, preserving per-core prefetch/compute overlap.
    b = min(b, max(1, pl.cdiv(nc, 4)))
    nb = pl.cdiv(nc, b)
    b = pl.cdiv(nc, nb)   # rebalance so the ragged tail block is as full as possible
    return b, nb


def max_downsampling(x):
    """Equivalent of MaxDownsampling.forward for NCHW float input."""
    K = DOWNSAMPLE_FACTOR
    assert K & (K - 1) == 0, "kernel assumes a power-of-two window"
    P = max(0, K // 2 - 1)               # = 3
    N, C, H, W = x.shape

    # PyTorch MaxPool2d output size (ceil_mode=False -> floor)
    H_out = (H + 2 * P - K) // K + 1
    W_out = (W + 2 * P - K) // K + 1
    Hc, Wc = H_out * K, W_out * K
    # Rows/cols past these indices are never read by any pooling window.
    H_used = min(H, Hc - P)
    W_used = min(W, Wc - P)

    NC = N * C
    x_flat = x.reshape(NC, H, W)

    vmem_limit = _vmem_limit_bytes()
    B, NB = _pick_block(NC, H, W, Hc, Wc, x.dtype.itemsize, vmem_limit)

    # Precomputed 0/1 selection matrix: output column j <- lane c0 + j*K of the
    # roll-tree result (fetched into VMEM once; no per-step iota/compare).
    c0 = K - 1 - P
    sel_np = np.zeros((W_out, Wc), np.float32)
    sel_np[np.arange(W_out), c0 + K * np.arange(W_out)] = 1.0
    sel = jnp.asarray(sel_np)

    kernel = functools.partial(_maxpool_kernel, K=K, P=P,
                               H_used=H_used, W_used=W_used)

    out = pl.pallas_call(
        kernel,
        out_shape=jax.ShapeDtypeStruct((NB, W_out, B * H_out), x.dtype),
        grid_spec=pltpu.PrefetchScalarGridSpec(
            num_scalar_prefetch=0,
            grid=(NB,),
            in_specs=[
                pl.BlockSpec((B, H, W), lambda i: (i, 0, 0)),
                pl.BlockSpec((W_out, Wc), lambda i: (0, 0)),   # same block -> fetched once
            ],
            out_specs=pl.BlockSpec((1, W_out, B * H_out), lambda i: (i, 0, 0)),
            scratch_shapes=[pltpu.VMEM((B, Hc, Wc), jnp.float32)],
        ),
        compiler_params=pltpu.CompilerParams(
            dimension_semantics=("parallel",),
            vmem_limit_bytes=vmem_limit,
        ),
    )(x_flat, sel)

    # Cheap XLA untranspose on the 64x-smaller output:
    # (NB, W_out, B, H_out) -> (NB, B, H_out, W_out) -> (N, C, H_out, W_out)
    out = out.reshape(NB, W_out, B, H_out).transpose(0, 2, 3, 1)
    out = out.reshape(NB * B, H_out, W_out)[:NC]
    return out.reshape(N, C, H_out, W_out)


def _reference(x):
    K = DOWNSAMPLE_FACTOR
    P = max(0, K // 2 - 1)
    return lax.reduce_window(
        x, -jnp.inf, lax.max,
        window_dimensions=(1, 1, K, K),
        window_strides=(1, 1, K, K),
        padding=((0, 0), (0, 0), (P, P), (P, P)))


if __name__ == "__main__":
    key = jax.random.PRNGKey(0)

    # Primary case (small NCHW input consistent with the module).
    x = jax.random.normal(key, (2, 4, 16, 16), dtype=jnp.float32)
    out = jax.block_until_ready(max_downsampling(x))
    ref = _reference(x)
    assert out.shape == (2, 4, 2, 2), out.shape
    assert jnp.allclose(out, ref), "mismatch vs reference reduce_window"

    # Odd spatial shapes: exercises the in-kernel padding / cropping paths.
    x2 = jax.random.normal(jax.random.PRNGKey(0), (1, 3, 21, 45), dtype=jnp.float32)
    out2 = jax.block_until_ready(max_downsampling(x2))
    ref2 = _reference(x2)
    assert out2.shape == ref2.shape, (out2.shape, ref2.shape)
    assert jnp.allclose(out2, ref2), "mismatch vs reference (odd shapes)"

    # Ragged channel count (NC=5 not divisible by the block) + larger magnitudes.
    x3 = 100.0 * jax.random.normal(jax.random.PRNGKey(1), (1, 5, 16, 16),
                                   dtype=jnp.float32)
    out3 = jax.block_until_ready(max_downsampling(x3))
    ref3 = _reference(x3)
    assert out3.shape == ref3.shape, (out3.shape, ref3.shape)
    assert jnp.allclose(out3, ref3), "mismatch vs reference (ragged NC)"

    print("KERNEL_OK")
</pallas_src>

<mosaic_0001>
module attributes {stable_mosaic.version = 11 : i64} {
  func.func @_maxpool_kernel(%arg0: i32, %arg1: memref<2x16x16xf32, #tpu.memory_space<vmem>>, %arg2: memref<2x16xf32, #tpu.memory_space<vmem>>, %arg3: memref<1x2x4xf32, #tpu.memory_space<vmem>>, %arg4: memref<2x16x16xf32, #tpu.memory_space<vmem>>) attributes {dimension_semantics = [#tpu.dimension_semantics<parallel>], iteration_bounds = array<i64: 4>, scalar_prefetch = 0 : i64, scratch_operands = 1 : i64, tpu.core_type = #tpu.core_type<tc>, window_params = [{transform_indices = @transform_0, window_bounds = array<i64: 2, 16, 16>}, {pipeline_mode = #tpu.pipeline_mode<synchronous>, transform_indices = @transform_1, window_bounds = array<i64: 2, 16>}, {transform_indices = @transform_2, window_bounds = array<i64: 1, 2, 4>}]} {
    %cst = arith.constant -3.38953139E+38 : f32
    %0 = vector.broadcast %cst : f32 to vector<2x3x16xf32>
    %c0 = arith.constant 0 : index
    %c0_0 = arith.constant 0 : index
    %c0_1 = arith.constant 0 : index
    %1 = vector.load %arg4[%c0, %c0_0, %c0_1] : memref<2x16x16xf32, #tpu.memory_space<vmem>>, vector<2x3x16xf32>
    tpu.vector_store %arg4[%c0, %c0_0, %c0_1], %0 {strides = array<i32>} : memref<2x16x16xf32, #tpu.memory_space<vmem>>, vector<2x3x16xf32>,
    %cst_2 = arith.constant -3.38953139E+38 : f32
    %2 = vector.broadcast %cst_2 : f32 to vector<2x13x3xf32>
    %c0_3 = arith.constant 0 : index
    %c3 = arith.constant 3 : index
    %c13 = arith.constant 13 : index
    %3 = vector.load %arg4[%c0_3, %c3, %c13] : memref<2x16x16xf32, #tpu.memory_space<vmem>>, vector<2x13x3xf32>
    tpu.vector_store %arg4[%c0_3, %c3, %c13], %2 {strides = array<i32>} : memref<2x16x16xf32, #tpu.memory_space<vmem>>, vector<2x13x3xf32>,
    %c0_4 = arith.constant 0 : index
    %c0_5 = arith.constant 0 : index
    %c0_6 = arith.constant 0 : index
    %4 = vector.load %arg1[%c0_4, %c0_5, %c0_6] : memref<2x16x16xf32, #tpu.memory_space<vmem>>, vector<2x13x13xf32>
    %c0_7 = arith.constant 0 : index
    %c3_8 = arith.constant 3 : index
    %c0_9 = arith.constant 0 : index
    %5 = vector.load %arg4[%c0_7, %c3_8, %c0_9] : memref<2x16x16xf32, #tpu.memory_space<vmem>>, vector<2x13x13xf32>
    tpu.vector_store %arg4[%c0_7, %c3_8, %c0_9], %4 {strides = array<i32>} : memref<2x16x16xf32, #tpu.memory_space<vmem>>, vector<2x13x13xf32>,
    %c0_10 = arith.constant 0 : index
    %c0_11 = arith.constant 0 : index
    %c0_12 = arith.constant 0 : index
    %6 = vector.load %arg4[%c0_10, %c0_11, %c0_12] : memref<2x16x16xf32, #tpu.memory_space<vmem>>, vector<2x16x16xf32>
    %7 = vector.shape_cast %6 : vector<2x16x16xf32> to vector<4x8x16xf32>
    %cst_13 = arith.constant dense<0xFF800000> : vector<4x16xf32>
    %8 = vector.multi_reduction <maximumf>, %7, %cst_13 [1] : vector<4x8x16xf32> to vector<4x16xf32>
    %c1_i32 = arith.constant 1 : i32
    %9 = tpu.dynamic_rotate %8 by %c1_i32 dim 1 : vector<4x16xf32>, i32 -> vector<4x16xf32>
    %10 = arith.maximumf %8, %9 : vector<4x16xf32>
    %c2_i32 = arith.constant 2 : i32
    %11 = tpu.dynamic_rotate %10 by %c2_i32 dim 1 : vector<4x16xf32>, i32 -> vector<4x16xf32>
    %12 = arith.maximumf %10, %11 : vector<4x16xf32>
    %c4_i32 = arith.constant 4 : i32
    %13 = tpu.dynamic_rotate %12 by %c4_i32 dim 1 : vector<4x16xf32>, i32 -> vector<4x16xf32>
    %14 = arith.maximumf %12, %13 : vector<4x16xf32>
    %c0_14 = arith.constant 0 : index
    %c0_15 = arith.constant 0 : index
    %15 = vector.load %arg2[%c0_14, %c0_15] : memref<2x16xf32, #tpu.memory_space<vmem>>, vector<2x16xf32>
    %cst_16 = arith.constant dense<0.000000e+00> : vector<2x4xf32>
    %16 = tpu.matmul %15, %14, %cst_16 {dimension_numbers = #tpu.dot_dimension_numbers<[1], [1], [0], [0], [0, 0, 1, 0], [], []>, precision = #tpu.contract_precision<fp32>} : vector<2x16xf32>, vector<4x16xf32>, vector<2x4xf32> -> vector<2x4xf32>
    %c0_17 = arith.constant 0 : index
    %c0_18 = arith.constant 0 : index
    %c0_19 = arith.constant 0 : index
    %17 = vector.load %arg3[%c0_17, %c0_18, %c0_19] : memref<1x2x4xf32, #tpu.memory_space<vmem>>, vector<1x2x4xf32>
    %18 = vector.shape_cast %17 : vector<1x2x4xf32> to vector<2x4xf32>
    %19 = vector.shape_cast %16 : vector<2x4xf32> to vector<1x2x4xf32>
    tpu.vector_store %arg3[%c0_17, %c0_18, %c0_19], %19 {strides = array<i32>} : memref<1x2x4xf32, #tpu.memory_space<vmem>>, vector<1x2x4xf32>,
    return
  }
  func.func @transform_0(%arg0: i32) -> (i32, i32, i32) {
    %c0_i32 = arith.constant 0 : i32
    %c0_i32_0 = arith.constant 0 : i32
    %c0_i32_1 = arith.constant 0 : i32
    return %arg0, %c0_i32, %c0_i32_0 : i32, i32, i32
  }
  func.func @transform_1(%arg0: i32) -> (i32, i32) {
    %c0_i32 = arith.constant 0 : i32
    %c0_i32_0 = arith.constant 0 : i32
    %c0_i32_1 = arith.constant 0 : i32
    return %c0_i32, %c0_i32_0 : i32, i32
  }
  func.func @transform_2(%arg0: i32) -> (i32, i32, i32) {
    %c0_i32 = arith.constant 0 : i32
    %c0_i32_0 = arith.constant 0 : i32
    %c0_i32_1 = arith.constant 0 : i32
    return %arg0, %c0_i32, %c0_i32_0 : i32, i32, i32
  }
}

</mosaic_0001>

<llo_original>
// kernel: tpu_custom_call.1
$region0: #{tpu_custom_call.1}
  #allocation0 [shape = 'u32[]', space=smem, size = 0x4, offset = 0x4, fixed_abs, tag = 'smem constant byte address 0x4 - core index']
  #allocation1 [shape = 'u32[144,128]{1,0:T(1,128)}', space=vmem, size = 0x12000, scoped, tag = 'internal scratch']
  #allocation2 [shape = 'f32[2,16,16]{2,1,0:T(8,128)}', space=vmem, size = 0x4000, scoped, tag = 'scratch operand']
  %s0 = inlined_call_operand.hbm [shape: f32[8,16,16], index: 0, kind: input, shape index: {}]
  %s1 = inlined_call_operand.vmem [shape: f32[2,16], index: 1, kind: input, shape index: {}]
  %s2 = inlined_call_operand.hbm [shape: f32[4,2,4], index: 2, kind: output, shape index: {}]
  %s3 = sld [smem:[#allocation0]]
  $region45: #{tpu_custom_call.1} parent=0
    _
  %s5 = ssub.s32 1, %s3
  %s6 = scalar_select 0, %s5, %s3
  $region1: #{tpu_custom_call.1} parent=0
    #allocation3 [shape = 'u8[32768]{0}', space=vmem, size = 0x8000, scoped, tag = 'input window, operand 0']
    #allocation4 [shape = 's32[2]{0}', space=sflag, size = 0x8, scoped, tag = 'scoped memory for tpu_custom_call.1']
    #allocation5 [shape = 's32[2]{0}', space=sflag, size = 0x8, scoped, tag = 'scoped memory for tpu_custom_call.1']
    #allocation6 [shape = 'u8[2048]{0}', space=vmem, size = 0x800, scoped, tag = 'output window, operand 0']
    %7 = vsyncpa [#allocation4], 0
    %s8 = scalar_lea.sflag [#allocation4], 1
    %9 = vsyncpa %s8, 0
    %10 = vsyncpa [#allocation5], 0
    %s11 = scalar_lea.sflag [#allocation5], 1
    %12 = vsyncpa %s11, 0
    loop: start=0, step=1, limit=6
    $region2: #{tpu_custom_call.1} parent=1 // loop_pre_header
      _
    $region3: #{tpu_custom_call.1} parent=1 // loop_header
      %s14 = sphi 0, %s18
      %p15 = scmp.ge.s32.totalorder %s14, 6
      %s24 = sphi 0, %s26
      %s27 = sphi 0, %s24
      %s28 = sphi 0, %s27
      %s44 = sphi 0, %s28
      %s48 = sphi 0, %s48
      %s50 = sphi 0, %s48
      %s51 = sphi 0, %s50
      %s65 = sphi 0, %s51
      %s71 = sphi 0, %s73
      %s74 = sphi 0, %s71
      %s75 = sphi 0, %s74
      %s91 = sphi 0, %s75
    $region4: #{tpu_custom_call.1} parent=1 // loop_header_branch
      %17 = sbr.rel (%p15) target = $region8
    $region5: #{tpu_custom_call.1} parent=1 // loop_body
      %s19 = ssub.s32 %s14, 1
      %s20 = ssub.s32 %s14, 2
      %s21 = sadd.s32 %s14, 1
      %s22 = ssub.s32 %s14, %s21
      %p23 = scmp.eq.s32.totalorder %s22, 0
      %s25 = sadd.s32 %s24, 1
      %s26 = scalar_select %p23, %s24, %s25
      %p29 = pneg %p23
      %p30 = scmp.eq.s32.totalorder %s14, 3
      %p31 = por %p29, %p30
      %p32 = scmp.ne.s32.totalorder %s24, %s27
      %p33 = scmp.eq.s32.totalorder %s14, 0
      %p34 = por %p32, %p33
      %p35 = scmp.ne.s32.totalorder %s24, %s27
      %p36 = scmp.eq.s32.totalorder %s19, 3
      %p37 = por %p35, %p36
      %p38 = scmp.ne.s32.totalorder %s27, %s28
      %p39 = scmp.eq.s32.totalorder %s19, 0
      %p40 = por %p38, %p39
      %p41 = scmp.ne.s32.totalorder %s27, %s28
      %p42 = scmp.eq.s32.totalorder %s20, 3
      %p43 = por %p41, %p42
      %p45 = scmp.ne.s32.totalorder %s28, %s44
      %p46 = scmp.eq.s32.totalorder %s20, 0
      %p47 = por %p45, %p46
      %s49 = sadd.s32 %s48, 1
      %p52 = scmp.eq.s32.totalorder %s14, 3
      %p53 = scmp.ne.s32.totalorder %s48, %s50
      %p54 = scmp.eq.s32.totalorder %s14, 0
      %p55 = por %p53, %p54
      %p56 = scmp.ne.s32.totalorder %s48, %s50
      %p57 = scmp.eq.s32.totalorder %s19, 3
      %p58 = por %p56, %p57
      %p59 = scmp.ne.s32.totalorder %s50, %s51
      %p60 = scmp.eq.s32.totalorder %s19, 0
      %p61 = por %p59, %p60
      %p62 = scmp.ne.s32.totalorder %s50, %s51
      %p63 = scmp.eq.s32.totalorder %s20, 3
      %p64 = por %p62, %p63
      %p66 = scmp.ne.s32.totalorder %s51, %s65
      %p67 = scmp.eq.s32.totalorder %s20, 0
      %p68 = por %p66, %p67
      %s69 = ssub.s32 %s14, %s21
      %p70 = scmp.eq.s32.totalorder %s69, 0
      %s72 = sadd.s32 %s71, 1
      %s73 = scalar_select %p70, %s71, %s72
      %p76 = pneg %p70
      %p77 = scmp.eq.s32.totalorder %s14, 3
      %p78 = por %p76, %p77
      %p79 = scmp.ne.s32.totalorder %s71, %s74
      %p80 = scmp.eq.s32.totalorder %s14, 0
      %p81 = por %p79, %p80
      %p82 = scmp.ne.s32.totalorder %s71, %s74
      %p83 = scmp.eq.s32.totalorder %s19, 3
      %p84 = por %p82, %p83
      %p85 = scmp.ne.s32.totalorder %s74, %s75
      %p86 = scmp.eq.s32.totalorder %s19, 0
      %p87 = por %p85, %p86
      %p88 = scmp.ne.s32.totalorder %s74, %s75
      %p89 = scmp.eq.s32.totalorder %s20, 3
      %p90 = por %p88, %p89
      %p92 = scmp.ne.s32.totalorder %s75, %s91
      %p93 = scmp.eq.s32.totalorder %s20, 0
      %p94 = por %p92, %p93
      %p95 = scmp.le.s32.totalorder 1, %s14
      %p96 = scmp.lt.s32.totalorder %s14, 5
      %p97 = pnand %p95, %p96
      %p98 = pneg %p97
      // Predicated region
      $region9: #{tpu_custom_call.1} parent=5 // pred_check
        _
      $region10: #{tpu_custom_call.1} parent=5 // pred_check_branch
        %100 = sbr.rel (%p97) target = $region12
      $region11: #{tpu_custom_call.1} parent=5 // pred_region
        %s101 = ssub.s32 %s14, 1
        // Predicated region
        $region13: #{tpu_custom_call.1} parent=11 // pred_check
          %p102 = pneg %p61
        $region14: #{tpu_custom_call.1} parent=11 // pred_check_branch
          %104 = sbr.rel (%p102) target = $region16
        $region15: #{tpu_custom_call.1} parent=11 // pred_region
          _
        $region16: #{tpu_custom_call.1} parent=11 // pred_fallthru
          _
      $region12: #{tpu_custom_call.1} parent=5 // pred_fallthru
        _
      %p105 = scmp.lt.s32.totalorder %s14, 4
      // Predicated region
      $region17: #{tpu_custom_call.1} parent=5 // pred_check
        %p106 = pneg %p105
      $region18: #{tpu_custom_call.1} parent=5 // pred_check_branch
        %108 = sbr.rel (%p106) target = $region20
      $region19: #{tpu_custom_call.1} parent=5 // pred_region
        // Predicated region
        $region21: #{tpu_custom_call.1} parent=19 // pred_check
          %p109 = pneg %p34
        $region22: #{tpu_custom_call.1} parent=19 // pred_check_branch
          %111 = sbr.rel (%p109) target = $region24
        $region23: #{tpu_custom_call.1} parent=19 // pred_region
          %s112 = sand.u32 %s24, 1
          %s113 = scalar_lea.sflag [#allocation4], %s112
          %s114 = sand.u32 %s24, 1
          %s115 = smul.addr %s114, 32
          %s116 = scalar_lea.vmem [#allocation3], %s115
          %s117 = smul.u32 2, %s14
          %s119 = ssub.s32 512, 512
          %120 = vsyncadd %s113, %s119
          %s121 = smul.addr %s117, 2
          %s122 = smul.addr %s121, 128
          %s123 = scalar_lea.hbm %s0, %s122
          %s124 = sshll.u32 %s116, 4
          %s125 = int_to_ptr.vmem [resolvable:$true] %s124
          %130 = dma.hbm_to_vmem [thread:$0]  %s123, 512, %s125, %s113, 128, 128, 8
        $region24: #{tpu_custom_call.1} parent=19 // pred_fallthru
          _
      $region20: #{tpu_custom_call.1} parent=5 // pred_fallthru
        _
      %p131 = scmp.le.s32.totalorder 1, %s14
      %p132 = scmp.lt.s32.totalorder %s14, 5
      %p133 = pnand %p131, %p132
      %p134 = pneg %p133
      // Predicated region
      $region25: #{tpu_custom_call.1} parent=5 // pred_check
        _
      $region26: #{tpu_custom_call.1} parent=5 // pred_check_branch
        %136 = sbr.rel (%p133) target = $region28
      $region27: #{tpu_custom_call.1} parent=5 // pred_region
        %s137 = ssub.s32 %s14, 1
        %s138 = sand.u32 %s27, 1
        %s139 = scalar_lea.sflag [#allocation4], %s138
        %s140 = sand.u32 %s27, 1
        %s141 = smul.addr %s140, 32
        %s142 = scalar_lea.vmem [#allocation3], %s141
        // Predicated region
        $region29: #{tpu_custom_call.1} parent=27 // pred_check
          %p143 = pneg %p40
        $region30: #{tpu_custom_call.1} parent=27 // pred_check_branch
          %145 = sbr.rel (%p143) target = $region32
        $region31: #{tpu_custom_call.1} parent=27 // pred_region
          %146 = dma.done %s139, 512
        $region32: #{tpu_custom_call.1} parent=27 // pred_fallthru
          _
        %s147 = sand.u32 %s27, 1
        %s148 = scalar_lea.sflag [#allocation4], %s147
        %s149 = sand.u32 %s27, 1
        %s150 = smul.addr %s149, 32
        %s151 = scalar_lea.vmem [#allocation3], %s150
        %p152 = pneg %p40
        %p153 = pneg %p37
        %p154 = pneg %p61
        %p155 = pneg %p58
        %p156 = pneg %p87
        %p157 = pneg %p84
        %s158 = sand.u32 %s74, 1
        %s159 = scalar_lea.sflag [#allocation5], %s158
        %s160 = sand.u32 %s74, 1
        %s161 = smul.addr %s160, 2
        %s162 = scalar_lea.vmem [#allocation6], %s161
        %s163 = smul.u32 2, %s19
        %vm164 = vcmask 124928
        %165 = vst.msk [vmem:[#allocation2] sm:$0x7] %vm164, -3.3895314e+38
        %166 = vst.msk [vmem:[#allocation2 + $0x10] sm:$0x7] %vm164, -3.3895314e+38
        %vm167 = vcmask 130152
        %168 = vst.msk [vmem:[#allocation2 + $0x3] sm:$0xff] %vm167, -3.3895314e+38
        %vm169 = vcmask 127080
        %170 = vst.msk [vmem:[#allocation2 + $0xb] sm:$0x1f] %vm169, -3.3895314e+38
        %171 = vst.msk [vmem:[#allocation2 + $0x13] sm:$0xff] %vm167, -3.3895314e+38
        %172 = vst.msk [vmem:[#allocation2 + $0x1b] sm:$0x1f] %vm169, -3.3895314e+38
        %v173 = vld [vmem:[%s142] sm:$0xff]
        %v174 = vld [vmem:[%s142 + $0x8] sm:$0x1f]
        %v175 = vld [vmem:[%s142 + $0x10] sm:$0xff]
        %v176 = vld [vmem:[%s142 + $0x18] sm:$0x1f]
        %vm177 = vcmask 105472
        %178 = vst.msk [vmem:[#allocation2 + $0x3] sm:$0xff] %vm177, %v173
        %vm179 = vcmask 102400
        %180 = vst.msk [vmem:[#allocation2 + $0xb] sm:$0x1f] %vm179, %v174
        %181 = vst.msk [vmem:[#allocation2 + $0x13] sm:$0xff] %vm177, %v175
        %182 = vst.msk [vmem:[#allocation2 + $0x1b] sm:$0x1f] %vm179, %v176
        %v183 = vld [vmem:[#allocation2] sm:$0xff]
        %v184 = vld [vmem:[#allocation2 + $0x8] sm:$0xff]
        %v185 = vld [vmem:[#allocation2 + $0x10] sm:$0xff]
        %v186 = vld [vmem:[#allocation2 + $0x18] sm:$0xff]
        %vm187 = vcmask 130048
        %v188 = vsel %vm187, %v183, -inf
        %v189 = vrot.slane %v188, 4
        %v190 = vmax.f32 %v188, %v189
        %v191 = vrot.slane %v190, 2
        %v192 = vmax.f32 %v190, %v191
        %v193 = vrot.slane %v192, 1
        %v194 = vmax.f32 %v192, %v193
        %v195 = vsel %vm187, %v184, -inf
        %v196 = vrot.slane %v195, 4
        %v197 = vmax.f32 %v195, %v196
        %v198 = vrot.slane %v197, 2
        %v199 = vmax.f32 %v197, %v198
        %v200 = vrot.slane %v199, 1
        %v201 = vmax.f32 %v199, %v200
        %v202 = vsel %vm187, %v185, -inf
        %v203 = vrot.slane %v202, 4
        %v204 = vmax.f32 %v202, %v203
        %v205 = vrot.slane %v204, 2
        %v206 = vmax.f32 %v204, %v205
        %v207 = vrot.slane %v206, 1
        %v208 = vmax.f32 %v206, %v207
        %v209 = vsel %vm187, %v186, -inf
        %v210 = vrot.slane %v209, 4
        %v211 = vmax.f32 %v209, %v210
        %v212 = vrot.slane %v211, 2
        %v213 = vmax.f32 %v211, %v212
        %v214 = vrot.slane %v213, 1
        %v215 = vmax.f32 %v213, %v214
        %vm220 = vcmask 1041409
        %v221 = vsel %vm220, %v201, %v194
        %vm222 = vcmask 1042434
        %v223 = vsel %vm222, %v208, %v221
        %vm224 = vcmask 1043459
        %v225 = vsel %vm224, %v215, %v223
        %vm227 = vcmask 1047680
        %228 = vrot.lane.b32.xlu0 %v225, 16
        %v229 = vpop.permute.xlu0 %228
        %v230 = vsel %vm227, %v229, %v225
        %231 = vrot.lane.b32.xlu0 %v230, 16
        %v232 = vpop.permute.xlu0 %231
        %v233 = vsel %vm227, %v232, %v225
        %v235 = vrot.slane %v233, 1
        %v236 = vrot.slane %v233, 2
        %v237 = vrot.slane %v233, 3
        %238 = vrot.lane.b32.xlu0 %v233, 113
        %v239 = vpop.permute.xlu0 %238
        %240 = vrot.lane.b32.xlu0 %v235, 113
        %v241 = vpop.permute.xlu0 %240
        %242 = vrot.lane.b32.xlu0 %v236, 113
        %v243 = vpop.permute.xlu0 %242
        %244 = vrot.lane.b32.xlu0 %v237, 113
        %v245 = vpop.permute.xlu0 %244
        %v250 = vmax.f32 %v194, %v239
        %v251 = vmax.f32 %v201, %v241
        %v252 = vmax.f32 %v208, %v243
        %v253 = vmax.f32 %v215, %v245
        %v258 = vrot.slane %v251, 7
        %v259 = vsel %vm220, %v258, %v250
        %v260 = vrot.slane %v252, 6
        %v261 = vsel %vm222, %v260, %v259
        %v262 = vrot.slane %v253, 5
        %v263 = vsel %vm224, %v262, %v261
        %265 = vrot.lane.b32.xlu0 %v263, 16
        %v266 = vpop.permute.xlu0 %265
        %v267 = vsel %vm227, %v266, %v263
        %268 = vrot.lane.b32.xlu0 %v267, 16
        %v269 = vpop.permute.xlu0 %268
        %v270 = vsel %vm227, %v269, %v263
        %v272 = vrot.slane %v270, 1
        %v273 = vrot.slane %v270, 2
        %v274 = vrot.slane %v270, 3
        %275 = vrot.lane.b32.xlu0 %v270, 114
        %v276 = vpop.permute.xlu0 %275
        %277 = vrot.lane.b32.xlu0 %v272, 114
        %v278 = vpop.permute.xlu0 %277
        %279 = vrot.lane.b32.xlu0 %v273, 114
        %v280 = vpop.permute.xlu0 %279
        %281 = vrot.lane.b32.xlu0 %v274, 114
        %v282 = vpop.permute.xlu0 %281
        %v287 = vmax.f32 %v250, %v276
        %v288 = vmax.f32 %v251, %v278
        %v289 = vmax.f32 %v252, %v280
        %v290 = vmax.f32 %v253, %v282
        %v295 = vrot.slane %v288, 7
        %v296 = vsel %vm220, %v295, %v287
        %v297 = vrot.slane %v289, 6
        %v298 = vsel %vm222, %v297, %v296
        %v299 = vrot.slane %v290, 5
        %v300 = vsel %vm224, %v299, %v298
        %302 = vrot.lane.b32.xlu0 %v300, 16
        %v303 = vpop.permute.xlu0 %302
        %v304 = vsel %vm227, %v303, %v300
        %305 = vrot.lane.b32.xlu0 %v304, 16
        %v306 = vpop.permute.xlu0 %305
        %v307 = vsel %vm227, %v306, %v300
        %v309 = vrot.slane %v307, 1
        %v310 = vrot.slane %v307, 2
        %v311 = vrot.slane %v307, 3
        %312 = vrot.lane.b32.xlu0 %v307, 116
        %v313 = vpop.permute.xlu0 %312
        %314 = vrot.lane.b32.xlu0 %v309, 116
        %v315 = vpop.permute.xlu0 %314
        %316 = vrot.lane.b32.xlu0 %v310, 116
        %v317 = vpop.permute.xlu0 %316
        %318 = vrot.lane.b32.xlu0 %v311, 116
        %v319 = vpop.permute.xlu0 %318
        %v324 = vmax.f32 %v287, %v313
        %v325 = vmax.f32 %v288, %v315
        %v326 = vmax.f32 %v289, %v317
        %v327 = vmax.f32 %v290, %v319
        %v328 = vld [vmem:[%s1] sm:$0x3]
        %v333 = vrot.slane %v325, 7
        %v334 = vsel %vm220, %v333, %v324
        %v335 = vrot.slane %v326, 6
        %v336 = vsel %vm222, %v335, %v334
        %v337 = vrot.slane %v327, 5
        %v338 = vsel %vm224, %v337, %v336
        %v340 = vsel %vm187, %v328, 0
        %v342 = vsel %vm187, %v338, 0
        %344 = vmatprep.subr.mxu0 0.0
        %v345 = vand.u32 %v342, 4294901760
        %346 = vmatpush1.xpose.msra.mxu0 %v345
        %347 = vmatprep.subr.mxu0 0.0
        %348 = vmatpush1.xpose.msra.mxu0 0.0
        %349 = vmatprep.subr.mxu0 0.0
        %350 = vmatpush1.xpose.msra.mxu0 0.0
        %351 = vmatprep.subr.mxu0 0.0
        %352 = vmatpush1.xpose.msra.mxu0 0.0
        %353 = vmatprep.subr.mxu0 0.0
        %354 = vmatpush1.xpose.msra.mxu0 0.0
        %355 = vmatprep.subr.mxu0 0.0
        %356 = vmatpush1.xpose.msra.mxu0 0.0
        %357 = vmatprep.subr.mxu0 0.0
        %358 = vmatpush1.xpose.msra.mxu0 0.0
        %359 = vmatprep.subr.mxu0 0.0
        %360 = vmatpush1.xpose.msra.mxu0 0.0
        %361 = vmatprep.subr.mxu0 0.0
        %362 = vmatpush1.xpose.msra.mxu0 0.0
        %363 = vmatprep.subr.mxu0 0.0
        %364 = vmatpush1.xpose.msra.mxu0 0.0
        %365 = vmatprep.subr.mxu0 0.0
        %366 = vmatpush1.xpose.msra.mxu0 0.0
        %367 = vmatprep.subr.mxu0 0.0
        %368 = vmatpush1.xpose.msra.mxu0 0.0
        %369 = vmatprep.subr.mxu0 0.0
        %370 = vmatpush1.xpose.msra.mxu0 0.0
        %371 = vmatprep.subr.mxu0 0.0
        %372 = vmatpush1.xpose.msra.mxu0 0.0
        %373 = vmatprep.subr.mxu0 0.0
        %374 = vmatpush1.xpose.msra.mxu0 0.0
        %375 = vmatprep.subr.mxu0 0.0
        %376 = vmatpush1.xpose.msra.mxu0 0.0
        %377 = vmatprep.subr.mxu0 0.0
        %378 = vmatpush1.xpose.msra.mxu0 0.0
        %379 = vmatprep.subr.mxu0 0.0
        %380 = vmatpush1.xpose.msra.mxu0 0.0
        %381 = vmatprep.subr.mxu0 0.0
        %382 = vmatpush1.xpose.msra.mxu0 0.0
        %383 = vmatprep.subr.mxu0 0.0
        %384 = vmatpush1.xpose.msra.mxu0 0.0
        %385 = vmatprep.subr.mxu0 0.0
        %386 = vmatpush1.xpose.msra.mxu0 0.0
        %387 = vmatprep.subr.mxu0 0.0
        %388 = vmatpush1.xpose.msra.mxu0 0.0
        %389 = vmatprep.subr.mxu0 0.0
        %390 = vmatpush1.xpose.msra.mxu0 0.0
        %391 = vmatprep.subr.mxu0 0.0
        %392 = vmatpush1.xpose.msra.mxu0 0.0
        %393 = vmatprep.subr.mxu0 0.0
        %394 = vmatpush1.xpose.msra.mxu0 0.0
        %395 = vmatprep.subr.mxu0 0.0
        %396 = vmatpush1.xpose.msra.mxu0 0.0
        %397 = vmatprep.subr.mxu0 0.0
        %398 = vmatpush1.xpose.msra.mxu0 0.0
        %399 = vmatprep.subr.mxu0 0.0
        %400 = vmatpush1.xpose.msra.mxu0 0.0
        %401 = vmatprep.subr.mxu0 0.0
        %402 = vmatpush1.xpose.msra.mxu0 0.0
        %403 = vmatprep.subr.mxu0 0.0
        %404 = vmatpush1.xpose.msra.mxu0 0.0
        %405 = vmatprep.subr.mxu0 0.0
        %406 = vmatpush1.xpose.msra.mxu0 0.0
        %407 = vmatprep.subr.mxu0 0.0
        %408 = vmatpush1.xpose.msra.mxu0 0.0
        %409 = vmatprep.mubr.f32.mxu0 0.0
        %v410 = vand.u32 %v340, 4294901760
        %v411 = vsub.f32 %v340, %v410
        %v412 = vand.u32 %v411, 4294901760
        %v413 = vsub.f32 %v411, %v412
        %v414 = vand.u32 %v413, 4294901760
        %415 = vmatmul.mubr.f32.gmra.mrb[0].mxu0 %v414
        %v416 = vpop.f32.mrb[0].mxu0
        %v417 = vadd.f32 0.0, %v416
        %v418 = vpop.f32.mrb[0].mxu0
        %419 = vdwg.mxu0
        %420 = vmatprep.subr.mxu0 0.0
        %v421 = vand.u32 %v342, 4294901760
        %v422 = vsub.f32 %v342, %v421
        %v423 = vand.u32 %v422, 4294901760
        %v424 = vsub.f32 %v422, %v423
        %v425 = vand.u32 %v424, 4294901760
        %426 = vmatpush1.xpose.msra.mxu0 %v425
        %427 = vmatprep.subr.mxu0 0.0
        %428 = vmatpush1.xpose.msra.mxu0 0.0
        %429 = vmatprep.subr.mxu0 0.0
        %430 = vmatpush1.xpose.msra.mxu0 0.0
        %431 = vmatprep.subr.mxu0 0.0
        %432 = vmatpush1.xpose.msra.mxu0 0.0
        %433 = vmatprep.subr.mxu0 0.0
        %434 = vmatpush1.xpose.msra.mxu0 0.0
        %435 = vmatprep.subr.mxu0 0.0
        %436 = vmatpush1.xpose.msra.mxu0 0.0
        %437 = vmatprep.subr.mxu0 0.0
        %438 = vmatpush1.xpose.msra.mxu0 0.0
        %439 = vmatprep.subr.mxu0 0.0
        %440 = vmatpush1.xpose.msra.mxu0 0.0
        %441 = vmatprep.subr.mxu0 0.0
        %442 = vmatpush1.xpose.msra.mxu0 0.0
        %443 = vmatprep.subr.mxu0 0.0
        %444 = vmatpush1.xpose.msra.mxu0 0.0
        %445 = vmatprep.subr.mxu0 0.0
        %446 = vmatpush1.xpose.msra.mxu0 0.0
        %447 = vmatprep.subr.mxu0 0.0
        %448 = vmatpush1.xpose.msra.mxu0 0.0
        %449 = vmatprep.subr.mxu0 0.0
        %450 = vmatpush1.xpose.msra.mxu0 0.0
        %451 = vmatprep.subr.mxu0 0.0
        %452 = vmatpush1.xpose.msra.mxu0 0.0
        %453 = vmatprep.subr.mxu0 0.0
        %454 = vmatpush1.xpose.msra.mxu0 0.0
        %455 = vmatprep.subr.mxu0 0.0
        %456 = vmatpush1.xpose.msra.mxu0 0.0
        %457 = vmatprep.subr.mxu0 0.0
        %458 = vmatpush1.xpose.msra.mxu0 0.0
        %459 = vmatprep.subr.mxu0 0.0
        %460 = vmatpush1.xpose.msra.mxu0 0.0
        %461 = vmatprep.subr.mxu0 0.0
        %462 = vmatpush1.xpose.msra.mxu0 0.0
        %463 = vmatprep.subr.mxu0 0.0
        %464 = vmatpush1.xpose.msra.mxu0 0.0
        %465 = vmatprep.subr.mxu0 0.0
        %466 = vmatpush1.xpose.msra.mxu0 0.0
        %467 = vmatprep.subr.mxu0 0.0
        %468 = vmatpush1.xpose.msra.mxu0 0.0
        %469 = vmatprep.subr.mxu0 0.0
        %470 = vmatpush1.xpose.msra.mxu0 0.0
        %471 = vmatprep.subr.mxu0 0.0
        %472 = vmatpush1.xpose.msra.mxu0 0.0
        %473 = vmatprep.subr.mxu0 0.0
        %474 = vmatpush1.xpose.msra.mxu0 0.0
        %475 = vmatprep.subr.mxu0 0.0
        %476 = vmatpush1.xpose.msra.mxu0 0.0
        %477 = vmatprep.subr.mxu0 0.0
        %478 = vmatpush1.xpose.msra.mxu0 0.0
        %479 = vmatprep.subr.mxu0 0.0
        %480 = vmatpush1.xpose.msra.mxu0 0.0
        %481 = vmatprep.subr.mxu0 0.0
        %482 = vmatpush1.xpose.msra.mxu0 0.0
        %483 = vmatprep.subr.mxu0 0.0
        %484 = vmatpush1.xpose.msra.mxu0 0.0
        %485 = vmatprep.subr.mxu0 0.0
        %486 = vmatpush1.xpose.msra.mxu0 0.0
        %487 = vmatprep.subr.mxu0 0.0
        %488 = vmatpush1.xpose.msra.mxu0 0.0
        %489 = vmatprep.mubr.f32.mxu0 0.0
        %v490 = vand.u32 %v340, 4294901760
        %491 = vmatmul.mubr.f32.gmra.mrb[0].mxu0 %v490
        %v492 = vpop.f32.mrb[0].mxu0
        %v493 = vadd.f32 %v417, %v492
        %v494 = vpop.f32.mrb[0].mxu0
        %495 = vdwg.mxu0
        %496 = vmatprep.subr.mxu0 0.0
        %v497 = vand.u32 %v342, 4294901760
        %v498 = vsub.f32 %v342, %v497
        %499 = vmatpush1.xpose.msra.mxu0 %v498
        %500 = vmatprep.subr.mxu0 0.0
        %501 = vmatpush1.xpose.msra.mxu0 0.0
        %502 = vmatprep.subr.mxu0 0.0
        %503 = vmatpush1.xpose.msra.mxu0 0.0
        %504 = vmatprep.subr.mxu0 0.0
        %505 = vmatpush1.xpose.msra.mxu0 0.0
        %506 = vmatprep.subr.mxu0 0.0
        %507 = vmatpush1.xpose.msra.mxu0 0.0
        %508 = vmatprep.subr.mxu0 0.0
        %509 = vmatpush1.xpose.msra.mxu0 0.0
        %510 = vmatprep.subr.mxu0 0.0
        %511 = vmatpush1.xpose.msra.mxu0 0.0
        %512 = vmatprep.subr.mxu0 0.0
        %513 = vmatpush1.xpose.msra.mxu0 0.0
        %514 = vmatprep.subr.mxu0 0.0
        %515 = vmatpush1.xpose.msra.mxu0 0.0
        %516 = vmatprep.subr.mxu0 0.0
        %517 = vmatpush1.xpose.msra.mxu0 0.0
        %518 = vmatprep.subr.mxu0 0.0
        %519 = vmatpush1.xpose.msra.mxu0 0.0
        %520 = vmatprep.subr.mxu0 0.0
        %521 = vmatpush1.xpose.msra.mxu0 0.0
        %522 = vmatprep.subr.mxu0 0.0
        %523 = vmatpush1.xpose.msra.mxu0 0.0
        %524 = vmatprep.subr.mxu0 0.0
        %525 = vmatpush1.xpose.msra.mxu0 0.0
        %526 = vmatprep.subr.mxu0 0.0
        %527 = vmatpush1.xpose.msra.mxu0 0.0
        %528 = vmatprep.subr.mxu0 0.0
        %529 = vmatpush1.xpose.msra.mxu0 0.0
        %530 = vmatprep.subr.mxu0 0.0
        %531 = vmatpush1.xpose.msra.mxu0 0.0
        %532 = vmatprep.subr.mxu0 0.0
        %533 = vmatpush1.xpose.msra.mxu0 0.0
        %534 = vmatprep.subr.mxu0 0.0
        %535 = vmatpush1.xpose.msra.mxu0 0.0
        %536 = vmatprep.subr.mxu0 0.0
        %537 = vmatpush1.xpose.msra.mxu0 0.0
        %538 = vmatprep.subr.mxu0 0.0
        %539 = vmatpush1.xpose.msra.mxu0 0.0
        %540 = vmatprep.subr.mxu0 0.0
        %541 = vmatpush1.xpose.msra.mxu0 0.0
        %542 = vmatprep.subr.mxu0 0.0
        %543 = vmatpush1.xpose.msra.mxu0 0.0
        %544 = vmatprep.subr.mxu0 0.0
        %545 = vmatpush1.xpose.msra.mxu0 0.0
        %546 = vmatprep.subr.mxu0 0.0
        %547 = vmatpush1.xpose.msra.mxu0 0.0
        %548 = vmatprep.subr.mxu0 0.0
        %549 = vmatpush1.xpose.msra.mxu0 0.0
        %550 = vmatprep.subr.mxu0 0.0
        %551 = vmatpush1.xpose.msra.mxu0 0.0
        %552 = vmatprep.subr.mxu0 0.0
        %553 = vmatpush1.xpose.msra.mxu0 0.0
        %554 = vmatprep.subr.mxu0 0.0
        %555 = vmatpush1.xpose.msra.mxu0 0.0
        %556 = vmatprep.subr.mxu0 0.0
        %557 = vmatpush1.xpose.msra.mxu0 0.0
        %558 = vmatprep.subr.mxu0 0.0
        %559 = vmatpush1.xpose.msra.mxu0 0.0
        %560 = vmatprep.subr.mxu0 0.0
        %561 = vmatpush1.xpose.msra.mxu0 0.0
        %562 = vmatprep.mubr.f32.mxu0 0.0
        %v563 = vand.u32 %v340, 4294901760
        %v564 = vsub.f32 %v340, %v563
        %565 = vmatmul.mubr.f32.gmra.mrb[0].mxu0 %v564
        %v566 = vpop.f32.mrb[0].mxu0
        %v567 = vadd.f32 %v493, %v566
        %v568 = vpop.f32.mrb[0].mxu0
        %569 = vdwg.mxu0
        %570 = vmatprep.subr.mxu0 0.0
        %v571 = vand.u32 %v342, 4294901760
        %572 = vmatpush1.xpose.msra.mxu0 %v571
        %573 = vmatprep.subr.mxu0 0.0
        %574 = vmatpush1.xpose.msra.mxu0 0.0
        %575 = vmatprep.subr.mxu0 0.0
        %576 = vmatpush1.xpose.msra.mxu0 0.0
        %577 = vmatprep.subr.mxu0 0.0
        %578 = vmatpush1.xpose.msra.mxu0 0.0
        %579 = vmatprep.subr.mxu0 0.0
        %580 = vmatpush1.xpose.msra.mxu0 0.0
        %581 = vmatprep.subr.mxu0 0.0
        %582 = vmatpush1.xpose.msra.mxu0 0.0
        %583 = vmatprep.subr.mxu0 0.0
        %584 = vmatpush1.xpose.msra.mxu0 0.0
        %585 = vmatprep.subr.mxu0 0.0
        %586 = vmatpush1.xpose.msra.mxu0 0.0
        %587 = vmatprep.subr.mxu0 0.0
        %588 = vmatpush1.xpose.msra.mxu0 0.0
        %589 = vmatprep.subr.mxu0 0.0
        %590 = vmatpush1.xpose.msra.mxu0 0.0
        %591 = vmatprep.subr.mxu0 0.0
        %592 = vmatpush1.xpose.msra.mxu0 0.0
        %593 = vmatprep.subr.mxu0 0.0
        %594 = vmatpush1.xpose.msra.mxu0 0.0
        %595 = vmatprep.subr.mxu0 0.0
        %596 = vmatpush1.xpose.msra.mxu0 0.0
        %597 = vmatprep.subr.mxu0 0.0
        %598 = vmatpush1.xpose.msra.mxu0 0.0
        %599 = vmatprep.subr.mxu0 0.0
        %600 = vmatpush1.xpose.msra.mxu0 0.0
        %601 = vmatprep.subr.mxu0 0.0
        %602 = vmatpush1.xpose.msra.mxu0 0.0
        %603 = vmatprep.subr.mxu0 0.0
        %604 = vmatpush1.xpose.msra.mxu0 0.0
        %605 = vmatprep.subr.mxu0 0.0
        %606 = vmatpush1.xpose.msra.mxu0 0.0
        %607 = vmatprep.subr.mxu0 0.0
        %608 = vmatpush1.xpose.msra.mxu0 0.0
        %609 = vmatprep.subr.mxu0 0.0
        %610 = vmatpush1.xpose.msra.mxu0 0.0
        %611 = vmatprep.subr.mxu0 0.0
        %612 = vmatpush1.xpose.msra.mxu0 0.0
        %613 = vmatprep.subr.mxu0 0.0
        %614 = vmatpush1.xpose.msra.mxu0 0.0
        %615 = vmatprep.subr.mxu0 0.0
        %616 = vmatpush1.xpose.msra.mxu0 0.0
        %617 = vmatprep.subr.mxu0 0.0
        %618 = vmatpush1.xpose.msra.mxu0 0.0
        %619 = vmatprep.subr.mxu0 0.0
        %620 = vmatpush1.xpose.msra.mxu0 0.0
        %621 = vmatprep.subr.mxu0 0.0
        %622 = vmatpush1.xpose.msra.mxu0 0.0
        %623 = vmatprep.subr.mxu0 0.0
        %624 = vmatpush1.xpose.msra.mxu0 0.0
        %625 = vmatprep.subr.mxu0 0.0
        %626 = vmatpush1.xpose.msra.mxu0 0.0
        %627 = vmatprep.subr.mxu0 0.0
        %628 = vmatpush1.xpose.msra.mxu0 0.0
        %629 = vmatprep.subr.mxu0 0.0
        %630 = vmatpush1.xpose.msra.mxu0 0.0
        %631 = vmatprep.subr.mxu0 0.0
        %632 = vmatpush1.xpose.msra.mxu0 0.0
        %633 = vmatprep.subr.mxu0 0.0
        %634 = vmatpush1.xpose.msra.mxu0 0.0
        %635 = vmatprep.mubr.f32.mxu0 0.0
        %v636 = vand.u32 %v340, 4294901760
        %v637 = vsub.f32 %v340, %v636
        %v638 = vand.u32 %v637, 4294901760
        %639 = vmatmul.mubr.f32.gmra.mrb[0].mxu0 %v638
        %v640 = vpop.f32.mrb[0].mxu0
        %v641 = vadd.f32 %v567, %v640
        %v642 = vpop.f32.mrb[0].mxu0
        %643 = vdwg.mxu0
        %644 = vmatprep.subr.mxu0 0.0
        %v645 = vand.u32 %v342, 4294901760
        %v646 = vsub.f32 %v342, %v645
        %v647 = vand.u32 %v646, 4294901760
        %648 = vmatpush1.xpose.msra.mxu0 %v647
        %649 = vmatprep.subr.mxu0 0.0
        %650 = vmatpush1.xpose.msra.mxu0 0.0
        %651 = vmatprep.subr.mxu0 0.0
        %652 = vmatpush1.xpose.msra.mxu0 0.0
        %653 = vmatprep.subr.mxu0 0.0
        %654 = vmatpush1.xpose.msra.mxu0 0.0
        %655 = vmatprep.subr.mxu0 0.0
        %656 = vmatpush1.xpose.msra.mxu0 0.0
        %657 = vmatprep.subr.mxu0 0.0
        %658 = vmatpush1.xpose.msra.mxu0 0.0
        %659 = vmatprep.subr.mxu0 0.0
        %660 = vmatpush1.xpose.msra.mxu0 0.0
        %661 = vmatprep.subr.mxu0 0.0
        %662 = vmatpush1.xpose.msra.mxu0 0.0
        %663 = vmatprep.subr.mxu0 0.0
        %664 = vmatpush1.xpose.msra.mxu0 0.0
        %665 = vmatprep.subr.mxu0 0.0
        %666 = vmatpush1.xpose.msra.mxu0 0.0
        %667 = vmatprep.subr.mxu0 0.0
        %668 = vmatpush1.xpose.msra.mxu0 0.0
        %669 = vmatprep.subr.mxu0 0.0
        %670 = vmatpush1.xpose.msra.mxu0 0.0
        %671 = vmatprep.subr.mxu0 0.0
        %672 = vmatpush1.xpose.msra.mxu0 0.0
        %673 = vmatprep.subr.mxu0 0.0
        %674 = vmatpush1.xpose.msra.mxu0 0.0
        %675 = vmatprep.subr.mxu0 0.0
        %676 = vmatpush1.xpose.msra.mxu0 0.0
        %677 = vmatprep.subr.mxu0 0.0
        %678 = vmatpush1.xpose.msra.mxu0 0.0
        %679 = vmatprep.subr.mxu0 0.0
        %680 = vmatpush1.xpose.msra.mxu0 0.0
        %681 = vmatprep.subr.mxu0 0.0
        %682 = vmatpush1.xpose.msra.mxu0 0.0
        %683 = vmatprep.subr.mxu0 0.0
        %684 = vmatpush1.xpose.msra.mxu0 0.0
        %685 = vmatprep.subr.mxu0 0.0
        %686 = vmatpush1.xpose.msra.mxu0 0.0
        %687 = vmatprep.subr.mxu0 0.0
        %688 = vmatpush1.xpose.msra.mxu0 0.0
        %689 = vmatprep.subr.mxu0 0.0
        %690 = vmatpush1.xpose.msra.mxu0 0.0
        %691 = vmatprep.subr.mxu0 0.0
        %692 = vmatpush1.xpose.msra.mxu0 0.0
        %693 = vmatprep.subr.mxu0 0.0
        %694 = vmatpush1.xpose.msra.mxu0 0.0
        %695 = vmatprep.subr.mxu0 0.0
        %696 = vmatpush1.xpose.msra.mxu0 0.0
        %697 = vmatprep.subr.mxu0 0.0
        %698 = vmatpush1.xpose.msra.mxu0 0.0
        %699 = vmatprep.subr.mxu0 0.0
        %700 = vmatpush1.xpose.msra.mxu0 0.0
        %701 = vmatprep.subr.mxu0 0.0
        %702 = vmatpush1.xpose.msra.mxu0 0.0
        %703 = vmatprep.subr.mxu0 0.0
        %704 = vmatpush1.xpose.msra.mxu0 0.0
        %705 = vmatprep.subr.mxu0 0.0
        %706 = vmatpush1.xpose.msra.mxu0 0.0
        %707 = vmatprep.subr.mxu0 0.0
        %708 = vmatpush1.xpose.msra.mxu0 0.0
        %709 = vmatprep.subr.mxu0 0.0
        %710 = vmatpush1.xpose.msra.mxu0 0.0
        %711 = vmatprep.mubr.f32.mxu0 0.0
        %v712 = vand.u32 %v340, 4294901760
        %713 = vmatmul.mubr.f32.gmra.mrb[0].mxu0 %v712
        %v714 = vpop.f32.mrb[0].mxu0
        %v715 = vadd.f32 %v641, %v714
        %v716 = vpop.f32.mrb[0].mxu0
        %717 = vdwg.mxu0
        %718 = vmatprep.subr.mxu0 0.0
        %v719 = vand.u32 %v342, 4294901760
        %720 = vmatpush1.xpose.msra.mxu0 %v719
        %721 = vmatprep.subr.mxu0 0.0
        %722 = vmatpush1.xpose.msra.mxu0 0.0
        %723 = vmatprep.subr.mxu0 0.0
        %724 = vmatpush1.xpose.msra.mxu0 0.0
        %725 = vmatprep.subr.mxu0 0.0
        %726 = vmatpush1.xpose.msra.mxu0 0.0
        %727 = vmatprep.subr.mxu0 0.0
        %728 = vmatpush1.xpose.msra.mxu0 0.0
        %729 = vmatprep.subr.mxu0 0.0
        %730 = vmatpush1.xpose.msra.mxu0 0.0
        %731 = vmatprep.subr.mxu0 0.0
        %732 = vmatpush1.xpose.msra.mxu0 0.0
        %733 = vmatprep.subr.mxu0 0.0
        %734 = vmatpush1.xpose.msra.mxu0 0.0
        %735 = vmatprep.subr.mxu0 0.0
        %736 = vmatpush1.xpose.msra.mxu0 0.0
        %737 = vmatprep.subr.mxu0 0.0
        %738 = vmatpush1.xpose.msra.mxu0 0.0
        %739 = vmatprep.subr.mxu0 0.0
        %740 = vmatpush1.xpose.msra.mxu0 0.0
        %741 = vmatprep.subr.mxu0 0.0
        %742 = vmatpush1.xpose.msra.mxu0 0.0
        %743 = vmatprep.subr.mxu0 0.0
        %744 = vmatpush1.xpose.msra.mxu0 0.0
        %745 = vmatprep.subr.mxu0 0.0
        %746 = vmatpush1.xpose.msra.mxu0 0.0
        %747 = vmatprep.subr.mxu0 0.0
        %748 = vmatpush1.xpose.msra.mxu0 0.0
        %749 = vmatprep.subr.mxu0 0.0
        %750 = vmatpush1.xpose.msra.mxu0 0.0
        %751 = vmatprep.subr.mxu0 0.0
        %752 = vmatpush1.xpose.msra.mxu0 0.0
        %753 = vmatprep.subr.mxu0 0.0
        %754 = vmatpush1.xpose.msra.mxu0 0.0
        %755 = vmatprep.subr.mxu0 0.0
        %756 = vmatpush1.xpose.msra.mxu0 0.0
        %757 = vmatprep.subr.mxu0 0.0
        %758 = vmatpush1.xpose.msra.mxu0 0.0
        %759 = vmatprep.subr.mxu0 0.0
        %760 = vmatpush1.xpose.msra.mxu0 0.0
        %761 = vmatprep.subr.mxu0 0.0
        %762 = vmatpush1.xpose.msra.mxu0 0.0
        %763 = vmatprep.subr.mxu0 0.0
        %764 = vmatpush1.xpose.msra.mxu0 0.0
        %765 = vmatprep.subr.mxu0 0.0
        %766 = vmatpush1.xpose.msra.mxu0 0.0
        %767 = vmatprep.subr.mxu0 0.0
        %768 = vmatpush1.xpose.msra.mxu0 0.0
        %769 = vmatprep.subr.mxu0 0.0
        %770 = vmatpush1.xpose.msra.mxu0 0.0
        %771 = vmatprep.subr.mxu0 0.0
        %772 = vmatpush1.xpose.msra.mxu0 0.0
        %773 = vmatprep.subr.mxu0 0.0
        %774 = vmatpush1.xpose.msra.mxu0 0.0
        %775 = vmatprep.subr.mxu0 0.0
        %776 = vmatpush1.xpose.msra.mxu0 0.0
        %777 = vmatprep.subr.mxu0 0.0
        %778 = vmatpush1.xpose.msra.mxu0 0.0
        %779 = vmatprep.subr.mxu0 0.0
        %780 = vmatpush1.xpose.msra.mxu0 0.0
        %781 = vmatprep.subr.mxu0 0.0
        %782 = vmatpush1.xpose.msra.mxu0 0.0
        %783 = vmatprep.mubr.f32.mxu0 0.0
        %v784 = vand.u32 %v340, 4294901760
        %785 = vmatmul.mubr.f32.gmra.mrb[0].mxu0 %v784
        %v786 = vpop.f32.mrb[0].mxu0
        %v787 = vadd.f32 %v715, %v786
        %v788 = vpop.f32.mrb[0].mxu0
        %789 = vdwg.mxu0
        %vm790 = vcmask 25600
        %791 = vst.msk [vmem:[%s162] sm:$0x3] %vm790, %v787
        %s792 = sand.u32 %s74, 1
        %s793 = scalar_lea.sflag [#allocation5], %s792
        %s794 = sand.u32 %s74, 1
        %s795 = smul.addr %s794, 2
        %s796 = scalar_lea.vmem [#allocation6], %s795
        // Predicated region
        $region33: #{tpu_custom_call.1} parent=27 // pred_check
          %p797 = pneg %p84
        $region34: #{tpu_custom_call.1} parent=27 // pred_check_branch
          %799 = sbr.rel (%p797) target = $region36
        $region35: #{tpu_custom_call.1} parent=27 // pred_region
          %s801 = ssub.s32 32, 32
          %802 = vsyncadd %s793, %s801
          %s803 = smul.addr %s19, 32
          %s804 = scalar_lea.hbm %s2, %s803
          %s806 = sshll.u32 %s796, 4
          %s807 = int_to_ptr.vmem [resolvable:$true] %s806
          %809 = dma.vmem_to_hbm [thread:$0]  %s807, 32, %s804, %s793
        $region36: #{tpu_custom_call.1} parent=27 // pred_fallthru
          _
      $region28: #{tpu_custom_call.1} parent=5 // pred_fallthru
        _
      %p810 = scmp.le.s32.totalorder 2, %s14
      // Predicated region
      $region37: #{tpu_custom_call.1} parent=5 // pred_check
        %p811 = pneg %p810
      $region38: #{tpu_custom_call.1} parent=5 // pred_check_branch
        %813 = sbr.rel (%p811) target = $region40
      $region39: #{tpu_custom_call.1} parent=5 // pred_region
        %s814 = ssub.s32 %s14, 2
        // Predicated region
        $region41: #{tpu_custom_call.1} parent=39 // pred_check
          %p815 = pneg %p90
        $region42: #{tpu_custom_call.1} parent=39 // pred_check_branch
          %817 = sbr.rel (%p815) target = $region44
        $region43: #{tpu_custom_call.1} parent=39 // pred_region
          %s818 = sand.u32 %s75, 1
          %s819 = scalar_lea.sflag [#allocation5], %s818
          %s820 = sand.u32 %s75, 1
          %s821 = smul.addr %s820, 2
          %s822 = scalar_lea.vmem [#allocation6], %s821
          %823 = dma.done %s819, 32
        $region44: #{tpu_custom_call.1} parent=39 // pred_fallthru
          _
      $region40: #{tpu_custom_call.1} parent=5 // pred_fallthru
        _
    $region6: #{tpu_custom_call.1} parent=1 // loop_footer
      %s18 = sadd.s32 1, %s14
    $region7: #{tpu_custom_call.1} parent=1 // loop_footer_branch
      %13 = sbr.rel target = $region3
    $region8: #{tpu_custom_call.1} parent=1 // loop_exit
      _
    %824 = vsyncpa [#allocation4], 1
    %s825 = scalar_lea.sflag [#allocation4], 1
    %826 = vsyncpa %s825, 1
    %827 = vsyncpa [#allocation5], 1
    %s828 = scalar_lea.sflag [#allocation5], 1
    %829 = vsyncpa %s828, 1

</llo_original>
